<compile_context>
chip_gen: v5e
topology: v5e:2x2
jax: 0.10.0
libtpu: 0.0.40
codegen_flags: <defaults>
</compile_context>

<pallas_src>
import functools

import jax
import jax.numpy as jnp
from jax import lax
from jax.experimental import pallas as pl
from jax.experimental.pallas import tpu as pltpu


def _stable_softplus(x):
    # == jax.nn.softplus(x); exp/log only (always lowerable on Mosaic), 1 exp + 1 log.
    return jnp.maximum(x, 0.0) + jnp.log(1.0 + jnp.exp(-jnp.abs(x)))


def _logistic_loss_kernel(pos_ref, neg_ref, out_ref, *, tile_b, b_actual, num_tiles,
                          pos_scale, neg_scale, has_partial_tile):
    i = pl.program_id(0)

    # Native-dtype load, f32 upcast on the VPU (free under HBM slack).
    # TODO(synk): on v6e/v7x the softplus could run in bf16 for bf16 inputs; kept in
    # f32 so the same kernel is also exact on v5e (no bf16 VPU/EUP there).
    neg = neg_ref[...].astype(jnp.float32)            # (tile_b, N)
    sp_neg = _stable_softplus(neg)

    def _write(neg_sum):
        partial = neg_sum * neg_scale                  # hoisted divide: * 0.5/(B*N)

        @pl.when(i == 0)
        def _():
            # pos slab is lane-dense and VMEM-resident; padded slots are +1e9 so
            # softplus(-pad) == 0 exactly (no mask needed on this path).
            pos = pos_ref[...].astype(jnp.float32)
            pos_sum = jnp.sum(_stable_softplus(-pos))
            out_ref[...] = jnp.full(out_ref.shape, partial + pos_sum * pos_scale,
                                    dtype=jnp.float32)

        @pl.when(i != 0)
        def _():
            out_ref[...] = jnp.full(out_ref.shape, partial, dtype=jnp.float32)

    if not has_partial_tile:
        _write(jnp.sum(sp_neg))
    else:
        # Only the last tile has out-of-bounds rows; full tiles skip the select.
        @pl.when(i < num_tiles - 1)
        def _():
            _write(jnp.sum(sp_neg))

        @pl.when(i == num_tiles - 1)
        def _():
            row = i * tile_b + lax.broadcasted_iota(jnp.int32, sp_neg.shape, 0)
            # where-select (not multiply): OOB rows may hold NaN/Inf garbage.
            _write(jnp.sum(jnp.where(row < b_actual, sp_neg, 0.0)))


def logistic_loss(pos_scores: jax.Array, neg_scores: jax.Array) -> jax.Array:
    """Pallas equivalent of torch_kge LogisticLoss.forward. Returns a scalar f32."""
    assert pos_scores.ndim == 2 and pos_scores.shape[1] == 1
    assert neg_scores.ndim == 2 and neg_scores.shape[0] == pos_scores.shape[0]
    B, N = neg_scores.shape

    elem_bytes = jnp.dtype(neg_scores.dtype).itemsize
    lane_n = ((N + 127) // 128) * 128                 # VMEM lane padding of the block
    # ~4 MiB per neg block: amortizes per-grid-step overhead; 2x double-buffered plus
    # the small pos slab still fits v5e's 16 MiB scoped VMEM default.
    budget = 4 * 1024 * 1024
    tile_b = max(8, ((budget // (lane_n * elem_bytes)) // 8) * 8)

    if tile_b >= B:
        if B >= 16:
            # At least 2 tiles so the "parallel" grid axis feeds both v7x TensorCores.
            tile_b = (((B + 1) // 2 + 7) // 8) * 8
        else:
            tile_b = B            # single block equal to the full array (no 8|128 rule)

    num_tiles = -(-B // tile_b)
    has_partial_tile = (B % tile_b) != 0

    # Lane-dense pos slab: (cdiv(B,128), 128); padded slots = +1e9 -> softplus(-1e9)==0.
    rows = -(-B // 128)
    pad = rows * 128 - B
    pos_flat = pos_scores.reshape(B)
    if pad:
        pos_flat = jnp.concatenate(
            [pos_flat, jnp.full((pad,), 1e9, dtype=pos_flat.dtype)])
    pos_slab = pos_flat.reshape(rows, 128)

    kernel = functools.partial(
        _logistic_loss_kernel,
        tile_b=int(tile_b),
        b_actual=int(B),
        num_tiles=int(num_tiles),
        pos_scale=0.5 / float(B),          # mean over B positive scores, then /2
        neg_scale=0.5 / float(B * N),      # mean over B*N negative scores, then /2
        has_partial_tile=bool(has_partial_tile),
    )

    partials = pl.pallas_call(
        kernel,
        out_shape=jax.ShapeDtypeStruct((num_tiles * 8, 128), jnp.float32),
        grid=(num_tiles,),
        in_specs=[
            pl.BlockSpec((rows, 128), lambda i: (0, 0)),    # pos slab, VMEM-resident
            pl.BlockSpec((tile_b, N), lambda i: (i, 0)),    # neg rows for tile i
        ],
        out_specs=pl.BlockSpec((8, 128), lambda i: (i, 0)),
        compiler_params=pltpu.CompilerParams(
            dimension_semantics=("parallel",),              # no shared accumulator
            vmem_limit_bytes=32 * 1024 * 1024,
        ),
    )(pos_slab, neg_scores)

    # One scalar partial per tile (replicated across its (8, 128) block).
    return jnp.sum(partials.reshape(num_tiles, 8, 128)[:, 0, 0])


def _logistic_loss_ref(pos_scores, neg_scores):
    pos = pos_scores.astype(jnp.float32)
    neg = neg_scores.astype(jnp.float32)
    return (jax.nn.softplus(-pos).mean() + jax.nn.softplus(neg).mean()) * 0.5


if __name__ == "__main__":
    key = jax.random.PRNGKey(0)
    k1, k2, k3, k4, k5, k6 = jax.random.split(key, 6)

    # 1) Single full tile, N a multiple of 128.
    pos1 = jax.random.normal(k1, (8, 1), dtype=jnp.float32)
    neg1 = jax.random.normal(k2, (8, 128), dtype=jnp.float32)
    out1 = logistic_loss(pos1, neg1)
    jax.block_until_ready(out1)
    ref1 = _logistic_loss_ref(pos1, neg1)
    assert jnp.allclose(out1, ref1, rtol=1e-5, atol=1e-5), (out1, ref1)

    # 2) Two tiles with a partial (masked) last tile; exercises the pl.when mask path
    #    and the multi-tile parallel grid with pos handled on tile 0.
    pos2 = jax.random.normal(k3, (20, 1), dtype=jnp.float32)
    neg2 = jax.random.normal(k4, (20, 256), dtype=jnp.float32)
    out2 = logistic_loss(pos2, neg2)
    jax.block_until_ready(out2)
    ref2 = _logistic_loss_ref(pos2, neg2)
    assert jnp.allclose(out2, ref2, rtol=1e-5, atol=1e-5), (out2, ref2)

    # 3) B not a multiple of 8 and N not a multiple of 128 (full-array-block path).
    pos3 = jax.random.normal(k5, (10, 1), dtype=jnp.float32)
    neg3 = jax.random.normal(k6, (10, 96), dtype=jnp.float32)
    out3 = logistic_loss(pos3, neg3)
    jax.block_until_ready(out3)
    ref3 = _logistic_loss_ref(pos3, neg3)
    assert jnp.allclose(out3, ref3, rtol=1e-5, atol=1e-5), (out3, ref3)

    print("KERNEL_OK")
</pallas_src>

<mosaic_0001>
module attributes {stable_mosaic.version = 11 : i64} {
  func.func @_logistic_loss_kernel(%arg0: i32, %arg1: memref<1x128xf32, #tpu.memory_space<vmem>>, %arg2: memref<8x128xf32, #tpu.memory_space<vmem>>, %arg3: memref<8x128xf32, #tpu.memory_space<vmem>>) attributes {dimension_semantics = [#tpu.dimension_semantics<parallel>], iteration_bounds = array<i64: 1>, scalar_prefetch = 0 : i64, scratch_operands = 0 : i64, tpu.core_type = #tpu.core_type<tc>, window_params = [{pipeline_mode = #tpu.pipeline_mode<synchronous>, transform_indices = @transform_0, window_bounds = array<i64: 1, 128>}, {transform_indices = @transform_1, window_bounds = array<i64: 8, 128>}, {transform_indices = @transform_2, window_bounds = array<i64: 8, 128>}]} {
    %c0 = arith.constant 0 : index
    %c0_0 = arith.constant 0 : index
    %0 = vector.load %arg2[%c0, %c0_0] : memref<8x128xf32, #tpu.memory_space<vmem>>, vector<8x128xf32>
    %cst = arith.constant 0.000000e+00 : f32
    %1 = vector.broadcast %cst : f32 to vector<8x128xf32>
    %2 = arith.maximumf %0, %1 : vector<8x128xf32>
    %3 = math.absf %0 : vector<8x128xf32>
    %cst_1 = arith.constant 0.000000e+00 : f32
    %4 = vector.broadcast %cst_1 : f32 to vector<8x128xf32>
    %5 = arith.subf %4, %3 : vector<8x128xf32>
    %6 = math.exp %5 : vector<8x128xf32>
    %cst_2 = arith.constant 1.000000e+00 : f32
    %7 = vector.broadcast %cst_2 : f32 to vector<8x128xf32>
    %8 = arith.addf %7, %6 : vector<8x128xf32>
    %9 = math.log %8 : vector<8x128xf32>
    %10 = arith.addf %2, %9 : vector<8x128xf32>
    %11 = vector.shape_cast %10 : vector<8x128xf32> to vector<1x8x128xf32>
    %cst_3 = arith.constant dense<0.000000e+00> : vector<1xf32>
    %12 = vector.multi_reduction <add>, %11, %cst_3 [1, 2] : vector<1x8x128xf32> to vector<1xf32>
    %13 = vector.shape_cast %12 : vector<1xf32> to vector<1x1x1xf32>
    %14 = vector.extract %13[0, 0, 0] : f32 from vector<1x1x1xf32>
    %cst_4 = arith.constant 4.8828125E-4 : f32
    %15 = arith.mulf %14, %cst_4 : f32
    %c0_i32 = arith.constant 0 : i32
    %16 = arith.cmpi eq, %arg0, %c0_i32 : i32
    %17 = arith.extui %16 : i1 to i32
    %c0_i32_5 = arith.constant 0 : i32
    %18 = arith.cmpi ne, %17, %c0_i32_5 : i32
    scf.if %18 {
      %c0_8 = arith.constant 0 : index
      %c0_9 = arith.constant 0 : index
      %22 = vector.load %arg1[%c0_8, %c0_9] : memref<1x128xf32, #tpu.memory_space<vmem>>, vector<1x128xf32>
      %cst_10 = arith.constant 0.000000e+00 : f32
      %23 = vector.broadcast %cst_10 : f32 to vector<1x128xf32>
      %24 = arith.subf %23, %22 : vector<1x128xf32>
      %cst_11 = arith.constant 0.000000e+00 : f32
      %25 = vector.broadcast %cst_11 : f32 to vector<1x128xf32>
      %26 = arith.maximumf %24, %25 : vector<1x128xf32>
      %27 = math.absf %24 : vector<1x128xf32>
      %cst_12 = arith.constant 0.000000e+00 : f32
      %28 = vector.broadcast %cst_12 : f32 to vector<1x128xf32>
      %29 = arith.subf %28, %27 : vector<1x128xf32>
      %30 = math.exp %29 : vector<1x128xf32>
      %cst_13 = arith.constant 1.000000e+00 : f32
      %31 = vector.broadcast %cst_13 : f32 to vector<1x128xf32>
      %32 = arith.addf %31, %30 : vector<1x128xf32>
      %33 = math.log %32 : vector<1x128xf32>
      %34 = arith.addf %26, %33 : vector<1x128xf32>
      %35 = vector.shape_cast %34 : vector<1x128xf32> to vector<1x1x128xf32>
      %cst_14 = arith.constant dense<0.000000e+00> : vector<1xf32>
      %36 = vector.multi_reduction <add>, %35, %cst_14 [1, 2] : vector<1x1x128xf32> to vector<1xf32>
      %37 = vector.shape_cast %36 : vector<1xf32> to vector<1x1x1xf32>
      %38 = vector.extract %37[0, 0, 0] : f32 from vector<1x1x1xf32>
      %cst_15 = arith.constant 6.250000e-02 : f32
      %39 = arith.mulf %38, %cst_15 : f32
      %40 = arith.addf %15, %39 : f32
      %41 = vector.broadcast %40 : f32 to vector<8x128xf32>
      %c0_16 = arith.constant 0 : index
      %c0_17 = arith.constant 0 : index
      %42 = vector.load %arg3[%c0_16, %c0_17] : memref<8x128xf32, #tpu.memory_space<vmem>>, vector<8x128xf32>
      tpu.vector_store %arg3[%c0_16, %c0_17], %41 {strides = array<i32>} : memref<8x128xf32, #tpu.memory_space<vmem>>, vector<8x128xf32>,
    } else {
    }
    %c0_i32_6 = arith.constant 0 : i32
    %19 = arith.cmpi ne, %arg0, %c0_i32_6 : i32
    %20 = arith.extui %19 : i1 to i32
    %c0_i32_7 = arith.constant 0 : i32
    %21 = arith.cmpi ne, %20, %c0_i32_7 : i32
    scf.if %21 {
      %22 = vector.broadcast %15 : f32 to vector<8x128xf32>
      %c0_8 = arith.constant 0 : index
      %c0_9 = arith.constant 0 : index
      %23 = vector.load %arg3[%c0_8, %c0_9] : memref<8x128xf32, #tpu.memory_space<vmem>>, vector<8x128xf32>
      tpu.vector_store %arg3[%c0_8, %c0_9], %22 {strides = array<i32>} : memref<8x128xf32, #tpu.memory_space<vmem>>, vector<8x128xf32>,
    } else {
    }
    return
  }
  func.func @transform_0(%arg0: i32) -> (i32, i32) {
    %c0_i32 = arith.constant 0 : i32
    %c0_i32_0 = arith.constant 0 : i32
    %c0_i32_1 = arith.constant 0 : i32
    return %c0_i32, %c0_i32_0 : i32, i32
  }
  func.func @transform_1(%arg0: i32) -> (i32, i32) {
    %c0_i32 = arith.constant 0 : i32
    %c0_i32_0 = arith.constant 0 : i32
    return %arg0, %c0_i32 : i32, i32
  }
  func.func @transform_2(%arg0: i32) -> (i32, i32) {
    %c0_i32 = arith.constant 0 : i32
    %c0_i32_0 = arith.constant 0 : i32
    return %arg0, %c0_i32 : i32, i32
  }
}

</mosaic_0001>

<llo_original>
// kernel: tpu_custom_call.1
$region0: #{tpu_custom_call.1}
  #allocation0 [shape = 'u32[]', space=smem, size = 0x4, offset = 0x4, fixed_abs, tag = 'smem constant byte address 0x4 - core index']
  #allocation1 [shape = 'u32[72,128]{1,0:T(1,128)}', space=vmem, size = 0x9000, scoped, tag = 'internal scratch']
  %s0 = inlined_call_operand.hbm [shape: f32[1,128], index: 0, kind: input, shape index: {}]
  %s1 = inlined_call_operand.hbm [shape: f32[8,128], index: 1, kind: input, shape index: {}]
  %s2 = inlined_call_operand.hbm [shape: f32[8,128], index: 2, kind: output, shape index: {}]
  %s3 = sld [smem:[#allocation0]]
  $region34: #{tpu_custom_call.1} parent=0
    _
  %s5 = ssub.s32 1, %s3
  %s6 = scalar_select 0, %s5, %s3
  $region1: #{tpu_custom_call.1} parent=0
    #allocation2 [shape = 'u8[512]{0}', space=vmem, size = 0x400, scoped, tag = 'input window, operand 0, single buffered']
    #allocation3 [shape = 's32[1]{0}', space=sflag, size = 0x4, scoped, tag = 'scoped memory for tpu_custom_call.1']
    #allocation4 [shape = 's32[1]{0}', space=sflag, size = 0x4, scoped, tag = 'scoped memory for tpu_custom_call.1']
    #allocation5 [shape = 'u8[4096]{0}', space=vmem, size = 0x1000, scoped, tag = 'input window, operand 1, single buffered']
    #allocation6 [shape = 's32[1]{0}', space=sflag, size = 0x4, scoped, tag = 'scoped memory for tpu_custom_call.1']
    #allocation7 [shape = 'u8[4096]{0}', space=vmem, size = 0x1000, scoped, tag = 'output window, operand 0, single buffered']
    %7 = vsyncpa [#allocation3], 0
    %8 = vsyncpa [#allocation6], 0
    %9 = vsyncpa [#allocation4], 0
    // Predicated region
    $region2: #{tpu_custom_call.1} parent=1 // pred_check
      _
    $region3: #{tpu_custom_call.1} parent=1 // pred_check_branch
      %11 = sbr.rel (0) target = $region5
    $region4: #{tpu_custom_call.1} parent=1 // pred_region
      %13 = vsyncadd [#allocation3], 0
      %s15 = sshll.u32 %s0, 4
      %s16 = int_to_ptr.hbm [resolvable:$true] %s15
      %s17 = sshll.u32 [#allocation2], 4
      %s18 = int_to_ptr.vmem [resolvable:$true] %s17
      %20 = dma.hbm_to_vmem [thread:$0]  %s16, 16, %s18, [#allocation3]
    $region5: #{tpu_custom_call.1} parent=1 // pred_fallthru
      _
    // Predicated region
    $region6: #{tpu_custom_call.1} parent=1 // pred_check
      _
    $region7: #{tpu_custom_call.1} parent=1 // pred_check_branch
      %22 = sbr.rel (0) target = $region9
    $region8: #{tpu_custom_call.1} parent=1 // pred_region
      %24 = vsyncadd [#allocation6], 0
      %s26 = sshll.u32 %s1, 4
      %s27 = int_to_ptr.hbm [resolvable:$true] %s26
      %s28 = sshll.u32 [#allocation5], 4
      %s29 = int_to_ptr.vmem [resolvable:$true] %s28
      %31 = dma.hbm_to_vmem [thread:$0]  %s27, 128, %s29, [#allocation6]
    $region9: #{tpu_custom_call.1} parent=1 // pred_fallthru
      _
    // Predicated region
    $region10: #{tpu_custom_call.1} parent=1 // pred_check
      _
    $region11: #{tpu_custom_call.1} parent=1 // pred_check_branch
      %33 = sbr.rel (0) target = $region13
    $region12: #{tpu_custom_call.1} parent=1 // pred_region
      %35 = dma.done [#allocation3], 16
    $region13: #{tpu_custom_call.1} parent=1 // pred_fallthru
      _
    // Predicated region
    $region14: #{tpu_custom_call.1} parent=1 // pred_check
      _
    $region15: #{tpu_custom_call.1} parent=1 // pred_check_branch
      %37 = sbr.rel (0) target = $region17
    $region16: #{tpu_custom_call.1} parent=1 // pred_region
      %39 = dma.done [#allocation6], 128
    $region17: #{tpu_custom_call.1} parent=1 // pred_fallthru
      _
    %v40 = vld [vmem:[#allocation5] sm:$0xff]
    %v41 = vmax.f32 %v40, 0.0
    %v42 = vand.u32 2147483647, %v40
    %v43 = vsub.f32 0.0, %v42
    %v44 = vmul.f32 %v43, 1.442695
    %v45 = vpow.pop %v44
    %v46 = vadd.f32 %v45, 1.0
    %v47 = vlog2.pop %v46
    %v48 = vmul.f32 %v47, 0.6931472
    %v49 = vadd.f32 %v41, %v48
    %50 = vadd.xlane.f32.xlu0 %v49
    %v51 = vpop.xlane.xlu0 %50
    %v52 = vrot.slane %v51, 4
    %v53 = vadd.f32 %v51, %v52
    %v54 = vrot.slane %v53, 2
    %v55 = vadd.f32 %v53, %v54
    %v56 = vrot.slane %v55, 1
    %v57 = vadd.f32 %v55, %v56
    %s58 = vtos %v57
    %s59 = smul.f32 %s58, 0.00048828125
    %p60 = scmp.eq.s32.totalorder 0, 0
    // Predicated region
    $region18: #{tpu_custom_call.1} parent=1 // pred_check
      %p61 = pneg %p60
    $region19: #{tpu_custom_call.1} parent=1 // pred_check_branch
      %63 = sbr.rel (%p61) target = $region21
    $region20: #{tpu_custom_call.1} parent=1 // pred_region
      %v64 = vld [vmem:[#allocation2] sm:$0x1]
      %v65 = vsub.f32 0.0, %v64
      %v66 = vmax.f32 %v65, 0.0
      %v67 = vand.u32 2147483647, %v65
      %v68 = vsub.f32 0.0, %v67
      %v69 = vmul.f32 %v68, 1.442695
      %v70 = vpow.pop %v69
      %v71 = vadd.f32 %v70, 1.0
      %v72 = vlog2.pop %v71
      %v73 = vmul.f32 %v72, 0.6931472
      %v74 = vadd.f32 %v66, %v73
      %vm75 = vcmask 1040384
      %v76 = vsel %vm75, %v74, 0.0
      %77 = vadd.xlane.f32.xlu0 %v76
      %v78 = vpop.xlane.xlu0 %77
      %v79 = vrot.slane %v78, 4
      %v80 = vadd.f32 %v78, %v79
      %v81 = vrot.slane %v80, 2
      %v82 = vadd.f32 %v80, %v81
      %v83 = vrot.slane %v82, 1
      %v84 = vadd.f32 %v82, %v83
      %s85 = vtos %v84
      %s86 = smul.f32 %s85, 0.0625
      %s87 = sadd.f32 %s59, %s86
      %v88 = vstv %s87
      %89 = vst [vmem:[#allocation7] sm:$0xff] %v88
    $region21: #{tpu_custom_call.1} parent=1 // pred_fallthru
      _
    %p90 = scmp.ne.s32.totalorder 0, 0
    // Predicated region
    $region22: #{tpu_custom_call.1} parent=1 // pred_check
      %p91 = pneg %p90
    $region23: #{tpu_custom_call.1} parent=1 // pred_check_branch
      %93 = sbr.rel (%p91) target = $region25
    $region24: #{tpu_custom_call.1} parent=1 // pred_region
      %v94 = vstv %s59
      %95 = vst [vmem:[#allocation7] sm:$0xff] %v94
    $region25: #{tpu_custom_call.1} parent=1 // pred_fallthru
      _
    // Predicated region
    $region26: #{tpu_custom_call.1} parent=1 // pred_check
      _
    $region27: #{tpu_custom_call.1} parent=1 // pred_check_branch
      %97 = sbr.rel (0) target = $region29
    $region28: #{tpu_custom_call.1} parent=1 // pred_region
      %99 = vsyncadd [#allocation4], 0
      %s101 = sshll.u32 [#allocation7], 4
      %s102 = int_to_ptr.vmem [resolvable:$true] %s101
      %s103 = sshll.u32 %s2, 4
      %s104 = int_to_ptr.hbm [resolvable:$true] %s103
      %106 = dma.vmem_to_hbm [thread:$0]  %s102, 128, %s104, [#allocation4]
    $region29: #{tpu_custom_call.1} parent=1 // pred_fallthru
      _
    // Predicated region
    $region30: #{tpu_custom_call.1} parent=1 // pred_check
      _
    $region31: #{tpu_custom_call.1} parent=1 // pred_check_branch
      %108 = sbr.rel (0) target = $region33
    $region32: #{tpu_custom_call.1} parent=1 // pred_region
      %110 = dma.done [#allocation4], 128
    $region33: #{tpu_custom_call.1} parent=1 // pred_fallthru
      _
    %111 = vsyncpa [#allocation3], 1
    %112 = vsyncpa [#allocation6], 1
    %113 = vsyncpa [#allocation4], 1

</llo_original>
